<compile_context>
chip_gen: v7x
topology: tpu7x:2x2x1
jax: 0.10.0
libtpu: 0.0.40
codegen_flags: <defaults>
</compile_context>

<pallas_src>
import functools

import jax
import jax.numpy as jnp
from jax.experimental import pallas as pl
from jax.experimental.pallas import tpu as pltpu


def _regular_loss_kernel(nparts, gamma, inv_b2, eps, *refs):
    """refs = (x_ref_0, ..., x_ref_{P-1}, out_ref, s_ref).

    x_ref_i : (TB, D) tile of part i's rows (any float dtype, upcast here)
    out_ref : (1, 1)  final scalar loss (written only on the last grid step)
    s_ref   : (P, D)  VMEM scratch accumulating per-part row-sums of the
              normalized rows across the whole batch.
    """
    x_refs = refs[:nparts]
    out_ref = refs[nparts]
    s_ref = refs[nparts + 1]

    j = pl.program_id(0)
    nb = pl.num_programs(0)

    @pl.when(j == 0)
    def _():
        s_ref[...] = jnp.zeros_like(s_ref)

    for i in range(nparts):
        x = x_refs[i][...].astype(jnp.float32)                   # (TB, D)
        nrm = jnp.sqrt(jnp.sum(x * x, axis=-1, keepdims=True))   # (TB, 1) row L2 norms
        # Exact reciprocal (torch parity); only TB divides instead of TB*D.
        inv = jnp.float32(1.0) / (nrm + jnp.float32(eps))        # (TB, 1)
        partial = jnp.sum(x * inv, axis=0, keepdims=True)        # (1, D) row-sum of x_norm
        s_ref[pl.ds(i, 1), :] = s_ref[pl.ds(i, 1), :] + partial

    @pl.when(j == nb - 1)
    def _():
        s = s_ref[...]                                           # (P, D)
        # corr[i, j] = (s_i . s_j) / B^2  ==  mean(x_i @ x_j.T)
        corr = jax.lax.dot_general(
            s, s, (((1,), (1,)), ((), ())),
            preferred_element_type=jnp.float32) * jnp.float32(inv_b2)
        row = jax.lax.broadcasted_iota(jnp.int32, (nparts, nparts), 0)
        col = jax.lax.broadcasted_iota(jnp.int32, (nparts, nparts), 1)
        corr = jnp.where(row == col, 1.0 - corr, corr)           # diagonal: 1 - corr
        tri = jnp.where(row <= col, corr, jnp.zeros_like(corr))  # triu incl. diagonal
        loss = jnp.sum(tri, axis=1, keepdims=True)               # (P, 1) lane reduce
        loss = jnp.sum(loss, axis=0, keepdims=True)              # (1, 1) sublane reduce
        out_ref[...] = loss * jnp.float32(gamma)


def _squeeze_keep_batch(a):
    """torch's .squeeze(), but never collapses the batch axis (robust at B == 1)."""
    a = jnp.asarray(a)
    shape = (a.shape[0],) + tuple(s for s in a.shape[1:] if s != 1)
    assert len(shape) == 2, f"part features must squeeze to (B, D), got {a.shape}"
    return a.reshape(shape)


def _pick_row_tile(batch, feat, nparts, itemsize, target_bytes=4 << 20):
    """Largest row tile so the per-step input block (all parts) is ~target bytes."""
    row_bytes = max(1, nparts * feat * itemsize)
    tb = target_bytes // row_bytes
    if tb >= batch:
        return batch
    tb = max(8, (tb // 8) * 8)                 # sublane alignment
    while tb > 8 and batch % tb != 0:          # keep blocks exact (no padded rows)
        tb -= 8
    return tb if batch % tb == 0 else batch


def regular_loss(parts, gamma):
    """parts: list of nparts arrays, each squeezing to (B, D). Returns scalar loss."""
    xs = [_squeeze_keep_batch(p) for p in parts]   # no stack, no wrapper-side cast
    P = len(xs)
    B, D = xs[0].shape
    eps = 1e-8

    itemsize = jnp.dtype(xs[0].dtype).itemsize
    tb = _pick_row_tile(B, D, P, itemsize)
    nb = B // tb

    # Double-buffered input blocks + scratch + slack; cap below v7x's 64 MiB VMEM.
    block_bytes = P * tb * D * itemsize
    vmem_bytes = int(min(48 << 20, max(8 << 20, 2 * block_bytes + P * D * 4 + (2 << 20))))

    kernel = functools.partial(
        _regular_loss_kernel, P, float(gamma), 1.0 / float(B * B), eps)

    loss = pl.pallas_call(
        kernel,
        out_shape=jax.ShapeDtypeStruct((1, 1), jnp.float32),
        grid=(nb,),
        in_specs=[pl.BlockSpec((tb, D), lambda j: (j, 0)) for _ in range(P)],
        out_specs=pl.BlockSpec((1, 1), lambda j: (0, 0)),
        scratch_shapes=[pltpu.VMEM((P, D), jnp.float32)],
        compiler_params=pltpu.CompilerParams(
            dimension_semantics=("arbitrary",),
            vmem_limit_bytes=vmem_bytes),
    )(*xs)
    return loss[0, 0]


def reference(parts, gamma):
    """Pure-JAX replica of the PyTorch forward (explicit B x B matmuls + mean)."""
    eps = 1e-8
    xs = [_squeeze_keep_batch(p).astype(jnp.float32) for p in parts]
    xs = [v / (jnp.linalg.norm(v, axis=1, keepdims=True) + eps) for v in xs]
    P = len(xs)
    corr = jnp.zeros((P, P), jnp.float32)
    for i in range(P):
        for j in range(P):
            v = jnp.mean(xs[i] @ xs[j].T)
            if i == j:
                v = 1.0 - v
            corr = corr.at[i, j].set(v)
    return jnp.sum(jnp.triu(corr)) * gamma


if __name__ == "__main__":
    NPARTS, B, D = 4, 8, 32
    GAMMA = 0.05   # default gamma=0 makes the loss identically zero; use nonzero for the test

    key = jax.random.PRNGKey(0)
    keys = jax.random.split(key, NPARTS)
    # Part features as produced upstream (e.g. pooled maps): (B, D, 1, 1); squeezed in the loss.
    parts = [jax.random.normal(k, (B, D, 1, 1), jnp.float32) for k in keys]

    out = regular_loss(parts, GAMMA)
    out = jax.block_until_ready(out)

    ref = reference(parts, GAMMA)
    assert jnp.allclose(out, ref, atol=1e-5, rtol=1e-5), (float(out), float(ref))
    print("KERNEL_OK")
</pallas_src>

<mosaic_0001>
module attributes {stable_mosaic.version = 11 : i64} {
  func.func @_regular_loss_kernel(%arg0: i32, %arg1: memref<8x32xf32, #tpu.memory_space<vmem>>, %arg2: memref<8x32xf32, #tpu.memory_space<vmem>>, %arg3: memref<8x32xf32, #tpu.memory_space<vmem>>, %arg4: memref<8x32xf32, #tpu.memory_space<vmem>>, %arg5: memref<1x1xf32, #tpu.memory_space<vmem>>, %arg6: memref<4x32xf32, #tpu.memory_space<vmem>>) attributes {dimension_semantics = [#tpu.dimension_semantics<arbitrary>], iteration_bounds = array<i64: 1>, scalar_prefetch = 0 : i64, scratch_operands = 1 : i64, tpu.core_type = #tpu.core_type<tc>, window_params = [{transform_indices = @transform_0, window_bounds = array<i64: 8, 32>}, {transform_indices = @transform_1, window_bounds = array<i64: 8, 32>}, {transform_indices = @transform_2, window_bounds = array<i64: 8, 32>}, {transform_indices = @transform_3, window_bounds = array<i64: 8, 32>}, {pipeline_mode = #tpu.pipeline_mode<synchronous>, transform_indices = @transform_4, window_bounds = array<i64: 1, 1>}]} {
    %c0_i32 = arith.constant 0 : i32
    %0 = arith.cmpi eq, %arg0, %c0_i32 : i32
    %1 = arith.extui %0 : i1 to i32
    %c0_i32_0 = arith.constant 0 : i32
    %2 = arith.cmpi ne, %1, %c0_i32_0 : i32
    scf.if %2 {
      %cst_38 = arith.constant 0.000000e+00 : f32
      %70 = vector.broadcast %cst_38 : f32 to vector<4x32xf32>
      %c0_39 = arith.constant 0 : index
      %c0_40 = arith.constant 0 : index
      %71 = vector.load %arg6[%c0_39, %c0_40] : memref<4x32xf32, #tpu.memory_space<vmem>>, vector<4x32xf32>
      tpu.vector_store %arg6[%c0_39, %c0_40], %70 {strides = array<i32>} : memref<4x32xf32, #tpu.memory_space<vmem>>, vector<4x32xf32>,
    } else {
    }
    %c0 = arith.constant 0 : index
    %c0_1 = arith.constant 0 : index
    %3 = vector.load %arg1[%c0, %c0_1] : memref<8x32xf32, #tpu.memory_space<vmem>>, vector<8x32xf32>
    %4 = arith.mulf %3, %3 : vector<8x32xf32>
    %cst = arith.constant dense<0.000000e+00> : vector<8xf32>
    %5 = vector.multi_reduction <add>, %4, %cst [1] : vector<8x32xf32> to vector<8xf32>
    %6 = vector.shape_cast %5 : vector<8xf32> to vector<8x1xf32>
    %7 = math.sqrt %6 : vector<8x1xf32>
    %cst_2 = arith.constant 9.99999993E-9 : f32
    %8 = vector.broadcast %cst_2 : f32 to vector<8x1xf32>
    %9 = arith.addf %7, %8 : vector<8x1xf32>
    %cst_3 = arith.constant 1.000000e+00 : f32
    %10 = vector.broadcast %cst_3 : f32 to vector<8x1xf32>
    %11 = arith.divf %10, %9 : vector<8x1xf32>
    %12 = vector.broadcast %11 : vector<8x1xf32> to vector<8x32xf32>
    %13 = arith.mulf %3, %12 : vector<8x32xf32>
    %cst_4 = arith.constant dense<0.000000e+00> : vector<32xf32>
    %14 = vector.multi_reduction <add>, %13, %cst_4 [0] : vector<8x32xf32> to vector<32xf32>
    %15 = vector.shape_cast %14 : vector<32xf32> to vector<1x32xf32>
    %c0_5 = arith.constant 0 : index
    %c0_6 = arith.constant 0 : index
    %16 = vector.load %arg6[%c0_5, %c0_6] : memref<4x32xf32, #tpu.memory_space<vmem>>, vector<1x32xf32>
    %17 = arith.addf %16, %15 : vector<1x32xf32>
    %c0_7 = arith.constant 0 : index
    %c0_8 = arith.constant 0 : index
    %18 = vector.load %arg6[%c0_7, %c0_8] : memref<4x32xf32, #tpu.memory_space<vmem>>, vector<1x32xf32>
    tpu.vector_store %arg6[%c0_7, %c0_8], %17 {strides = array<i32>} : memref<4x32xf32, #tpu.memory_space<vmem>>, vector<1x32xf32>,
    %c0_9 = arith.constant 0 : index
    %c0_10 = arith.constant 0 : index
    %19 = vector.load %arg2[%c0_9, %c0_10] : memref<8x32xf32, #tpu.memory_space<vmem>>, vector<8x32xf32>
    %20 = arith.mulf %19, %19 : vector<8x32xf32>
    %cst_11 = arith.constant dense<0.000000e+00> : vector<8xf32>
    %21 = vector.multi_reduction <add>, %20, %cst_11 [1] : vector<8x32xf32> to vector<8xf32>
    %22 = vector.shape_cast %21 : vector<8xf32> to vector<8x1xf32>
    %23 = math.sqrt %22 : vector<8x1xf32>
    %cst_12 = arith.constant 9.99999993E-9 : f32
    %24 = vector.broadcast %cst_12 : f32 to vector<8x1xf32>
    %25 = arith.addf %23, %24 : vector<8x1xf32>
    %cst_13 = arith.constant 1.000000e+00 : f32
    %26 = vector.broadcast %cst_13 : f32 to vector<8x1xf32>
    %27 = arith.divf %26, %25 : vector<8x1xf32>
    %28 = vector.broadcast %27 : vector<8x1xf32> to vector<8x32xf32>
    %29 = arith.mulf %19, %28 : vector<8x32xf32>
    %cst_14 = arith.constant dense<0.000000e+00> : vector<32xf32>
    %30 = vector.multi_reduction <add>, %29, %cst_14 [0] : vector<8x32xf32> to vector<32xf32>
    %31 = vector.shape_cast %30 : vector<32xf32> to vector<1x32xf32>
    %c1 = arith.constant 1 : index
    %c0_15 = arith.constant 0 : index
    %32 = vector.load %arg6[%c1, %c0_15] : memref<4x32xf32, #tpu.memory_space<vmem>>, vector<1x32xf32>
    %33 = arith.addf %32, %31 : vector<1x32xf32>
    %c1_16 = arith.constant 1 : index
    %c0_17 = arith.constant 0 : index
    %34 = vector.load %arg6[%c1_16, %c0_17] : memref<4x32xf32, #tpu.memory_space<vmem>>, vector<1x32xf32>
    tpu.vector_store %arg6[%c1_16, %c0_17], %33 {strides = array<i32>} : memref<4x32xf32, #tpu.memory_space<vmem>>, vector<1x32xf32>,
    %c0_18 = arith.constant 0 : index
    %c0_19 = arith.constant 0 : index
    %35 = vector.load %arg3[%c0_18, %c0_19] : memref<8x32xf32, #tpu.memory_space<vmem>>, vector<8x32xf32>
    %36 = arith.mulf %35, %35 : vector<8x32xf32>
    %cst_20 = arith.constant dense<0.000000e+00> : vector<8xf32>
    %37 = vector.multi_reduction <add>, %36, %cst_20 [1] : vector<8x32xf32> to vector<8xf32>
    %38 = vector.shape_cast %37 : vector<8xf32> to vector<8x1xf32>
    %39 = math.sqrt %38 : vector<8x1xf32>
    %cst_21 = arith.constant 9.99999993E-9 : f32
    %40 = vector.broadcast %cst_21 : f32 to vector<8x1xf32>
    %41 = arith.addf %39, %40 : vector<8x1xf32>
    %cst_22 = arith.constant 1.000000e+00 : f32
    %42 = vector.broadcast %cst_22 : f32 to vector<8x1xf32>
    %43 = arith.divf %42, %41 : vector<8x1xf32>
    %44 = vector.broadcast %43 : vector<8x1xf32> to vector<8x32xf32>
    %45 = arith.mulf %35, %44 : vector<8x32xf32>
    %cst_23 = arith.constant dense<0.000000e+00> : vector<32xf32>
    %46 = vector.multi_reduction <add>, %45, %cst_23 [0] : vector<8x32xf32> to vector<32xf32>
    %47 = vector.shape_cast %46 : vector<32xf32> to vector<1x32xf32>
    %c2 = arith.constant 2 : index
    %c0_24 = arith.constant 0 : index
    %48 = vector.load %arg6[%c2, %c0_24] : memref<4x32xf32, #tpu.memory_space<vmem>>, vector<1x32xf32>
    %49 = arith.addf %48, %47 : vector<1x32xf32>
    %c2_25 = arith.constant 2 : index
    %c0_26 = arith.constant 0 : index
    %50 = vector.load %arg6[%c2_25, %c0_26] : memref<4x32xf32, #tpu.memory_space<vmem>>, vector<1x32xf32>
    tpu.vector_store %arg6[%c2_25, %c0_26], %49 {strides = array<i32>} : memref<4x32xf32, #tpu.memory_space<vmem>>, vector<1x32xf32>,
    %c0_27 = arith.constant 0 : index
    %c0_28 = arith.constant 0 : index
    %51 = vector.load %arg4[%c0_27, %c0_28] : memref<8x32xf32, #tpu.memory_space<vmem>>, vector<8x32xf32>
    %52 = arith.mulf %51, %51 : vector<8x32xf32>
    %cst_29 = arith.constant dense<0.000000e+00> : vector<8xf32>
    %53 = vector.multi_reduction <add>, %52, %cst_29 [1] : vector<8x32xf32> to vector<8xf32>
    %54 = vector.shape_cast %53 : vector<8xf32> to vector<8x1xf32>
    %55 = math.sqrt %54 : vector<8x1xf32>
    %cst_30 = arith.constant 9.99999993E-9 : f32
    %56 = vector.broadcast %cst_30 : f32 to vector<8x1xf32>
    %57 = arith.addf %55, %56 : vector<8x1xf32>
    %cst_31 = arith.constant 1.000000e+00 : f32
    %58 = vector.broadcast %cst_31 : f32 to vector<8x1xf32>
    %59 = arith.divf %58, %57 : vector<8x1xf32>
    %60 = vector.broadcast %59 : vector<8x1xf32> to vector<8x32xf32>
    %61 = arith.mulf %51, %60 : vector<8x32xf32>
    %cst_32 = arith.constant dense<0.000000e+00> : vector<32xf32>
    %62 = vector.multi_reduction <add>, %61, %cst_32 [0] : vector<8x32xf32> to vector<32xf32>
    %63 = vector.shape_cast %62 : vector<32xf32> to vector<1x32xf32>
    %c3 = arith.constant 3 : index
    %c0_33 = arith.constant 0 : index
    %64 = vector.load %arg6[%c3, %c0_33] : memref<4x32xf32, #tpu.memory_space<vmem>>, vector<1x32xf32>
    %65 = arith.addf %64, %63 : vector<1x32xf32>
    %c3_34 = arith.constant 3 : index
    %c0_35 = arith.constant 0 : index
    %66 = vector.load %arg6[%c3_34, %c0_35] : memref<4x32xf32, #tpu.memory_space<vmem>>, vector<1x32xf32>
    tpu.vector_store %arg6[%c3_34, %c0_35], %65 {strides = array<i32>} : memref<4x32xf32, #tpu.memory_space<vmem>>, vector<1x32xf32>,
    %c0_i32_36 = arith.constant 0 : i32
    %67 = arith.cmpi eq, %arg0, %c0_i32_36 : i32
    %68 = arith.extui %67 : i1 to i32
    %c0_i32_37 = arith.constant 0 : i32
    %69 = arith.cmpi ne, %68, %c0_i32_37 : i32
    scf.if %69 {
      %c0_38 = arith.constant 0 : index
      %c0_39 = arith.constant 0 : index
      %70 = vector.load %arg6[%c0_38, %c0_39] : memref<4x32xf32, #tpu.memory_space<vmem>>, vector<4x32xf32>
      %cst_40 = arith.constant dense<0.000000e+00> : vector<4x4xf32>
      %71 = tpu.matmul %70, %70, %cst_40 {dimension_numbers = #tpu.dot_dimension_numbers<[1], [1], [0], [0], [0, 0, 1, 0], [], []>} : vector<4x32xf32>, vector<4x32xf32>, vector<4x4xf32> -> vector<4x4xf32>
      %cst_41 = arith.constant 1.562500e-02 : f32
      %72 = vector.broadcast %cst_41 : f32 to vector<4x4xf32>
      %73 = arith.mulf %71, %72 : vector<4x4xf32>
      %74 = tpu.iota {dimensions = array<i32: 0>} : vector<4x4xi32>
      %75 = tpu.iota {dimensions = array<i32: 1>} : vector<4x4xi32>
      %76 = arith.cmpi eq, %74, %75 : vector<4x4xi32>
      %cst_42 = arith.constant 1.000000e+00 : f32
      %77 = vector.broadcast %cst_42 : f32 to vector<4x4xf32>
      %78 = arith.subf %77, %73 : vector<4x4xf32>
      %79 = arith.select %76, %78, %73 : vector<4x4xi1>, vector<4x4xf32>
      %80 = arith.cmpi sle, %74, %75 : vector<4x4xi32>
      %cst_43 = arith.constant 0.000000e+00 : f32
      %81 = vector.broadcast %cst_43 : f32 to vector<4x4xf32>
      %82 = arith.select %80, %79, %81 : vector<4x4xi1>, vector<4x4xf32>
      %cst_44 = arith.constant dense<0.000000e+00> : vector<4xf32>
      %83 = vector.multi_reduction <add>, %82, %cst_44 [1] : vector<4x4xf32> to vector<4xf32>
      %84 = vector.shape_cast %83 : vector<4xf32> to vector<4x1xf32>
      %cst_45 = arith.constant dense<0.000000e+00> : vector<1xf32>
      %85 = vector.multi_reduction <add>, %84, %cst_45 [0] : vector<4x1xf32> to vector<1xf32>
      %86 = vector.shape_cast %85 : vector<1xf32> to vector<1x1xf32>
      %cst_46 = arith.constant 5.000000e-02 : f32
      %87 = vector.broadcast %cst_46 : f32 to vector<1x1xf32>
      %88 = arith.mulf %86, %87 : vector<1x1xf32>
      %c0_47 = arith.constant 0 : index
      %c0_48 = arith.constant 0 : index
      %89 = vector.load %arg5[%c0_47, %c0_48] : memref<1x1xf32, #tpu.memory_space<vmem>>, vector<1x1xf32>
      tpu.vector_store %arg5[%c0_47, %c0_48], %88 {strides = array<i32>} : memref<1x1xf32, #tpu.memory_space<vmem>>, vector<1x1xf32>,
    } else {
    }
    return
  }
  func.func @transform_0(%arg0: i32) -> (i32, i32) {
    %c0_i32 = arith.constant 0 : i32
    %c0_i32_0 = arith.constant 0 : i32
    return %arg0, %c0_i32 : i32, i32
  }
  func.func @transform_1(%arg0: i32) -> (i32, i32) {
    %c0_i32 = arith.constant 0 : i32
    %c0_i32_0 = arith.constant 0 : i32
    return %arg0, %c0_i32 : i32, i32
  }
  func.func @transform_2(%arg0: i32) -> (i32, i32) {
    %c0_i32 = arith.constant 0 : i32
    %c0_i32_0 = arith.constant 0 : i32
    return %arg0, %c0_i32 : i32, i32
  }
  func.func @transform_3(%arg0: i32) -> (i32, i32) {
    %c0_i32 = arith.constant 0 : i32
    %c0_i32_0 = arith.constant 0 : i32
    return %arg0, %c0_i32 : i32, i32
  }
  func.func @transform_4(%arg0: i32) -> (i32, i32) {
    %c0_i32 = arith.constant 0 : i32
    %c0_i32_0 = arith.constant 0 : i32
    %c0_i32_1 = arith.constant 0 : i32
    return %c0_i32, %c0_i32_0 : i32, i32
  }
}

</mosaic_0001>

<llo_original>
// kernel: tpu_custom_call.1
$region0: #{tpu_custom_call.1}
  #allocation0 [shape = 'u32[]', space=smem, size = 0x4, offset = 0x4, fixed_abs, tag = 'smem constant byte address 0x4 - core index']
  #allocation1 [shape = 'u32[144,128]{1,0:T(1,128)}', space=vmem, size = 0x12000, scoped, tag = 'internal scratch']
  #allocation2 [shape = 'f32[4,32]{1,0:T(4,128)}', space=vmem, size = 0x800, scoped, tag = 'scratch operand']
  %s0 = inlined_call_operand.hbm [shape: f32[8,32], index: 0, kind: input, shape index: {}]
  %s1 = inlined_call_operand.hbm [shape: f32[8,32], index: 1, kind: input, shape index: {}]
  %s2 = inlined_call_operand.hbm [shape: f32[8,32], index: 2, kind: input, shape index: {}]
  %s3 = inlined_call_operand.vmem [shape: f32[8,32], index: 3, kind: input, shape index: {}]
  %s4 = inlined_call_operand.hbm [shape: f32[1,1], index: 4, kind: output, shape index: {}]
  %s5 = sld [smem:[#allocation0]]
  $region46: #{tpu_custom_call.1} parent=0
    _
  %s7 = ssub.s32 1, %s5
  %s8 = scalar_select 0, %s7, %s5
  $region1: #{tpu_custom_call.1} parent=0
    #allocation3 [shape = 'u8[4096]{0}', space=vmem, size = 0x1000, scoped, tag = 'input window, operand 0, single buffered']
    #allocation4 [shape = 's32[1]{0}', space=sflag, size = 0x4, scoped, tag = 'scoped memory for tpu_custom_call.1']
    #allocation5 [shape = 's32[1]{0}', space=sflag, size = 0x4, scoped, tag = 'scoped memory for tpu_custom_call.1']
    #allocation6 [shape = 'u8[4096]{0}', space=vmem, size = 0x1000, scoped, tag = 'input window, operand 1, single buffered']
    #allocation7 [shape = 's32[1]{0}', space=sflag, size = 0x4, scoped, tag = 'scoped memory for tpu_custom_call.1']
    #allocation8 [shape = 'u8[4096]{0}', space=vmem, size = 0x1000, scoped, tag = 'input window, operand 2, single buffered']
    #allocation9 [shape = 'u8[512]{0}', space=vmem, size = 0x400, scoped, tag = 'output window, operand 0, single buffered']
    %9 = vsyncpa [#allocation4], 0
    %10 = vsyncpa [#allocation7], 0
    %11 = vsyncpa [#allocation5], 0
    // Predicated region
    $region2: #{tpu_custom_call.1} parent=1 // pred_check
      _
    $region3: #{tpu_custom_call.1} parent=1 // pred_check_branch
      %13 = sbr.rel (0) target = $region5
    $region4: #{tpu_custom_call.1} parent=1 // pred_region
      %s15 = ssub.s32 128, 128
      %16 = vsyncadd [#allocation4], %s15
      %s18 = sshll.u32 [#allocation3], 4
      %s19 = int_to_ptr.vmem [resolvable:$true] %s18
      %21 = dma.hbm_to_vmem [thread:$0]  %s0, 128, %s19, [#allocation4]
    $region5: #{tpu_custom_call.1} parent=1 // pred_fallthru
      _
    // Predicated region
    $region6: #{tpu_custom_call.1} parent=1 // pred_check
      _
    $region7: #{tpu_custom_call.1} parent=1 // pred_check_branch
      %23 = sbr.rel (0) target = $region9
    $region8: #{tpu_custom_call.1} parent=1 // pred_region
      %s25 = ssub.s32 128, 128
      %26 = vsyncadd [#allocation7], %s25
      %s28 = sshll.u32 [#allocation6], 4
      %s29 = int_to_ptr.vmem [resolvable:$true] %s28
      %31 = dma.hbm_to_vmem [thread:$0]  %s1, 128, %s29, [#allocation7]
    $region9: #{tpu_custom_call.1} parent=1 // pred_fallthru
      _
    // Predicated region
    $region10: #{tpu_custom_call.1} parent=1 // pred_check
      _
    $region11: #{tpu_custom_call.1} parent=1 // pred_check_branch
      %33 = sbr.rel (0) target = $region13
    $region12: #{tpu_custom_call.1} parent=1 // pred_region
      %s35 = ssub.s32 128, 128
      %36 = vsyncadd [#allocation7], %s35
      %s38 = sshll.u32 [#allocation8], 4
      %s39 = int_to_ptr.vmem [resolvable:$true] %s38
      %41 = dma.hbm_to_vmem [thread:$0]  %s2, 128, %s39, [#allocation7]
    $region13: #{tpu_custom_call.1} parent=1 // pred_fallthru
      _
    // Predicated region
    $region14: #{tpu_custom_call.1} parent=1 // pred_check
      _
    $region15: #{tpu_custom_call.1} parent=1 // pred_check_branch
      %43 = sbr.rel (0) target = $region17
    $region16: #{tpu_custom_call.1} parent=1 // pred_region
      _
    $region17: #{tpu_custom_call.1} parent=1 // pred_fallthru
      _
    // Predicated region
    $region18: #{tpu_custom_call.1} parent=1 // pred_check
      _
    $region19: #{tpu_custom_call.1} parent=1 // pred_check_branch
      %45 = sbr.rel (0) target = $region21
    $region20: #{tpu_custom_call.1} parent=1 // pred_region
      %46 = dma.done [#allocation4], 128
    $region21: #{tpu_custom_call.1} parent=1 // pred_fallthru
      _
    // Predicated region
    $region22: #{tpu_custom_call.1} parent=1 // pred_check
      _
    $region23: #{tpu_custom_call.1} parent=1 // pred_check_branch
      %48 = sbr.rel (0) target = $region25
    $region24: #{tpu_custom_call.1} parent=1 // pred_region
      %49 = dma.done [#allocation7], 128
    $region25: #{tpu_custom_call.1} parent=1 // pred_fallthru
      _
    // Predicated region
    $region26: #{tpu_custom_call.1} parent=1 // pred_check
      _
    $region27: #{tpu_custom_call.1} parent=1 // pred_check_branch
      %51 = sbr.rel (0) target = $region29
    $region28: #{tpu_custom_call.1} parent=1 // pred_region
      %52 = dma.done [#allocation7], 128
    $region29: #{tpu_custom_call.1} parent=1 // pred_fallthru
      _
    %p53 = scmp.eq.s32.totalorder 0, 0
    // Predicated region
    $region30: #{tpu_custom_call.1} parent=1 // pred_check
      %p54 = pneg %p53
    $region31: #{tpu_custom_call.1} parent=1 // pred_check_branch
      %56 = sbr.rel (%p54) target = $region33
    $region32: #{tpu_custom_call.1} parent=1 // pred_region
      %vm57 = vcmask 257024
      %58 = vst.msk [vmem:[#allocation2] sm:$0xf] %vm57, 0.0
    $region33: #{tpu_custom_call.1} parent=1 // pred_fallthru
      _
    %v59 = vld [vmem:[#allocation3] sm:$0xff]
    %v60 = vmul.f32 %v59, %v59
    %vm61 = vcmask 261120
    %v62 = vsel %vm61, %v60, 0.0
    %63 = vadd.xlane.f32.xlu0 %v62
    %v64 = vpop.xlane.xlu0 %63
    %v65 = vrsqrt.pop %v64
    %v66 = vmul.f32 %v64, %v65
    %vm67 = vcmp.eq.f32.partialorder %v64, inf
    %v68 = vsel %vm67, %v64, %v66
    %vm69 = vcmp.eq.f32.partialorder %v64, 0.0
    %v70 = vand.u32 %v64, 2147483648
    %v71 = vsel %vm69, %v70, %v68
    %v72 = vadd.f32 %v71, 1e-08
    %v73 = vrcp.pop %v72
    %v74 = vmul.f32 1.0, %v73
    %v75 = vmul.f32 %v59, %v74
    %v76 = vsel %vm61, %v75, 0.0
    %v77 = vrot.slane %v76, 4
    %v78 = vadd.f32 %v76, %v77
    %v79 = vrot.slane %v78, 2
    %v80 = vadd.f32 %v78, %v79
    %v81 = vrot.slane %v80, 1
    %v82 = vadd.f32 %v80, %v81
    %v83 = vld [vmem:[#allocation2] sm:$0x1]
    %v84 = vadd.f32 %v83, %v82
    %vm85 = vcmask 253952
    %86 = vst.msk [vmem:[#allocation2] sm:$0x1] %vm85, %v84
    %v87 = vld [vmem:[#allocation6] sm:$0xff]
    %v88 = vmul.f32 %v87, %v87
    %v89 = vsel %vm61, %v88, 0.0
    %90 = vadd.xlane.f32.xlu0 %v89
    %v91 = vpop.xlane.xlu0 %90
    %v92 = vrsqrt.pop %v91
    %v93 = vmul.f32 %v91, %v92
    %vm94 = vcmp.eq.f32.partialorder %v91, inf
    %v95 = vsel %vm94, %v91, %v93
    %vm96 = vcmp.eq.f32.partialorder %v91, 0.0
    %v97 = vand.u32 %v91, 2147483648
    %v98 = vsel %vm96, %v97, %v95
    %v99 = vadd.f32 %v98, 1e-08
    %v100 = vrcp.pop %v99
    %v101 = vmul.f32 1.0, %v100
    %v102 = vmul.f32 %v87, %v101
    %v103 = vsel %vm61, %v102, 0.0
    %v104 = vrot.slane %v103, 4
    %v105 = vadd.f32 %v103, %v104
    %v106 = vrot.slane %v105, 2
    %v107 = vadd.f32 %v105, %v106
    %v108 = vrot.slane %v107, 1
    %v109 = vadd.f32 %v107, %v108
    %v110 = vld [vmem:[#allocation2 + $0x1] sm:$0x1]
    %v111 = vadd.f32 %v110, %v109
    %112 = vst.msk [vmem:[#allocation2 + $0x1] sm:$0x1] %vm85, %v111
    %v113 = vld [vmem:[#allocation8] sm:$0xff]
    %v114 = vmul.f32 %v113, %v113
    %v115 = vsel %vm61, %v114, 0.0
    %116 = vadd.xlane.f32.xlu0 %v115
    %v117 = vpop.xlane.xlu0 %116
    %v118 = vrsqrt.pop %v117
    %v119 = vmul.f32 %v117, %v118
    %vm120 = vcmp.eq.f32.partialorder %v117, inf
    %v121 = vsel %vm120, %v117, %v119
    %vm122 = vcmp.eq.f32.partialorder %v117, 0.0
    %v123 = vand.u32 %v117, 2147483648
    %v124 = vsel %vm122, %v123, %v121
    %v125 = vadd.f32 %v124, 1e-08
    %v126 = vrcp.pop %v125
    %v127 = vmul.f32 1.0, %v126
    %v128 = vmul.f32 %v113, %v127
    %v129 = vsel %vm61, %v128, 0.0
    %v130 = vrot.slane %v129, 4
    %v131 = vadd.f32 %v129, %v130
    %v132 = vrot.slane %v131, 2
    %v133 = vadd.f32 %v131, %v132
    %v134 = vrot.slane %v133, 1
    %v135 = vadd.f32 %v133, %v134
    %v136 = vld [vmem:[#allocation2 + $0x2] sm:$0x1]
    %v137 = vadd.f32 %v136, %v135
    %138 = vst.msk [vmem:[#allocation2 + $0x2] sm:$0x1] %vm85, %v137
    %v139 = vld [vmem:[%s3] sm:$0xff]
    %v140 = vmul.f32 %v139, %v139
    %v141 = vsel %vm61, %v140, 0.0
    %142 = vadd.xlane.f32.xlu0 %v141
    %v143 = vpop.xlane.xlu0 %142
    %v144 = vrsqrt.pop %v143
    %v145 = vmul.f32 %v143, %v144
    %vm146 = vcmp.eq.f32.partialorder %v143, inf
    %v147 = vsel %vm146, %v143, %v145
    %vm148 = vcmp.eq.f32.partialorder %v143, 0.0
    %v149 = vand.u32 %v143, 2147483648
    %v150 = vsel %vm148, %v149, %v147
    %v151 = vadd.f32 %v150, 1e-08
    %v152 = vrcp.pop %v151
    %v153 = vmul.f32 1.0, %v152
    %v154 = vmul.f32 %v139, %v153
    %v155 = vsel %vm61, %v154, 0.0
    %v156 = vrot.slane %v155, 4
    %v157 = vadd.f32 %v155, %v156
    %v158 = vrot.slane %v157, 2
    %v159 = vadd.f32 %v157, %v158
    %v160 = vrot.slane %v159, 1
    %v161 = vadd.f32 %v159, %v160
    %v162 = vld [vmem:[#allocation2 + $0x3] sm:$0x1]
    %v163 = vadd.f32 %v162, %v161
    %164 = vst.msk [vmem:[#allocation2 + $0x3] sm:$0x1] %vm85, %v163
    // Predicated region
    $region34: #{tpu_custom_call.1} parent=1 // pred_check
      %p165 = pneg %p53
    $region35: #{tpu_custom_call.1} parent=1 // pred_check_branch
      %167 = sbr.rel (%p165) target = $region37
    $region36: #{tpu_custom_call.1} parent=1 // pred_region
      %v168 = vld [vmem:[#allocation2] sm:$0xf]
      %v170 = vsel %vm61, %v168, 0
      %172 = vmatprep.subr.mxu0 0.0
      %173 = vmatpush1.xpose.msra.mxu0 %v170
      %174 = vmatprep.subr.mxu0 0.0
      %175 = vmatpush1.xpose.msra.mxu0 0.0
      %176 = vmatprep.subr.mxu0 0.0
      %177 = vmatpush1.xpose.msra.mxu0 0.0
      %178 = vmatprep.subr.mxu0 0.0
      %179 = vmatpush1.xpose.msra.mxu0 0.0
      %180 = vmatprep.subr.mxu0 0.0
      %181 = vmatpush1.xpose.msra.mxu0 0.0
      %182 = vmatprep.subr.mxu0 0.0
      %183 = vmatpush1.xpose.msra.mxu0 0.0
      %184 = vmatprep.subr.mxu0 0.0
      %185 = vmatpush1.xpose.msra.mxu0 0.0
      %186 = vmatprep.subr.mxu0 0.0
      %187 = vmatpush1.xpose.msra.mxu0 0.0
      %188 = vmatprep.subr.mxu0 0.0
      %189 = vmatpush1.xpose.msra.mxu0 0.0
      %190 = vmatprep.subr.mxu0 0.0
      %191 = vmatpush1.xpose.msra.mxu0 0.0
      %192 = vmatprep.subr.mxu0 0.0
      %193 = vmatpush1.xpose.msra.mxu0 0.0
      %194 = vmatprep.subr.mxu0 0.0
      %195 = vmatpush1.xpose.msra.mxu0 0.0
      %196 = vmatprep.subr.mxu0 0.0
      %197 = vmatpush1.xpose.msra.mxu0 0.0
      %198 = vmatprep.subr.mxu0 0.0
      %199 = vmatpush1.xpose.msra.mxu0 0.0
      %200 = vmatprep.subr.mxu0 0.0
      %201 = vmatpush1.xpose.msra.mxu0 0.0
      %202 = vmatprep.subr.mxu0 0.0
      %203 = vmatpush1.xpose.msra.mxu0 0.0
      %204 = vmatprep.subr.mxu0 0.0
      %205 = vmatpush1.xpose.msra.mxu0 0.0
      %206 = vmatprep.subr.mxu0 0.0
      %207 = vmatpush1.xpose.msra.mxu0 0.0
      %208 = vmatprep.subr.mxu0 0.0
      %209 = vmatpush1.xpose.msra.mxu0 0.0
      %210 = vmatprep.subr.mxu0 0.0
      %211 = vmatpush1.xpose.msra.mxu0 0.0
      %212 = vmatprep.subr.mxu0 0.0
      %213 = vmatpush1.xpose.msra.mxu0 0.0
      %214 = vmatprep.subr.mxu0 0.0
      %215 = vmatpush1.xpose.msra.mxu0 0.0
      %216 = vmatprep.subr.mxu0 0.0
      %217 = vmatpush1.xpose.msra.mxu0 0.0
      %218 = vmatprep.subr.mxu0 0.0
      %219 = vmatpush1.xpose.msra.mxu0 0.0
      %220 = vmatprep.subr.mxu0 0.0
      %221 = vmatpush1.xpose.msra.mxu0 0.0
      %222 = vmatprep.subr.mxu0 0.0
      %223 = vmatpush1.xpose.msra.mxu0 0.0
      %224 = vmatprep.subr.mxu0 0.0
      %225 = vmatpush1.xpose.msra.mxu0 0.0
      %226 = vmatprep.subr.mxu0 0.0
      %227 = vmatpush1.xpose.msra.mxu0 0.0
      %228 = vmatprep.subr.mxu0 0.0
      %229 = vmatpush1.xpose.msra.mxu0 0.0
      %230 = vmatprep.subr.mxu0 0.0
      %231 = vmatpush1.xpose.msra.mxu0 0.0
      %232 = vmatprep.subr.mxu0 0.0
      %233 = vmatpush1.xpose.msra.mxu0 0.0
      %234 = vmatprep.subr.mxu0 0.0
      %235 = vmatpush1.xpose.msra.mxu0 0.0
      %236 = vmatprep.mubr.f32.mxu0 0.0
      %237 = vmatmul.mubr.f32.gmra.mrb[0].mxu0 %v170
      %v238 = vpop.f32.mrb[0].mxu0
      %v239 = vadd.f32 0.0, %v238
      %v240 = vpop.f32.mrb[0].mxu0
      %241 = vdwg.mxu0
      %v242 = vmul.f32 %v239, 0.015625
      %v243 = vlaneseq
      %v244 = vshrl.u32 %v243, 7
      %v245 = vlaneseq
      %v246 = vand.u32 %v245, 127
      %vm247 = vcmp.eq.s32.totalorder %v244, %v246
      %v248 = vsub.f32 1.0, %v242
      %v249 = vsel %vm247, %v248, %v242
      %vm250 = vcmp.le.s32.totalorder %v244, %v246
      %v251 = vsel %vm250, %v249, 0.0
      %vm252 = vcmask 27648
      %v253 = vsel %vm252, %v251, 0.0
      %254 = vadd.xlane.f32.xlu0 %v253
      %v255 = vpop.xlane.xlu0 %254
      %vm256 = vcmask 1043456
      %v257 = vsel %vm256, %v255, 0.0
      %v258 = vrot.slane %v257, 4
      %v259 = vadd.f32 %v257, %v258
      %v260 = vrot.slane %v259, 2
      %v261 = vadd.f32 %v259, %v260
      %v262 = vrot.slane %v261, 1
      %v263 = vadd.f32 %v261, %v262
      %v264 = vmul.f32 %v263, 0.05
      %vm265 = vcmask 0
      %266 = vst.msk [vmem:[#allocation9] sm:$0x1] %vm265, %v264
    $region37: #{tpu_custom_call.1} parent=1 // pred_fallthru
      _
    // Predicated region
    $region38: #{tpu_custom_call.1} parent=1 // pred_check
      _
    $region39: #{tpu_custom_call.1} parent=1 // pred_check_branch
      %268 = sbr.rel (0) target = $region41
    $region40: #{tpu_custom_call.1} parent=1 // pred_region
      %s270 = ssub.s32 16, 16
      %271 = vsyncadd [#allocation5], %s270
      %s273 = sshll.u32 [#allocation9], 4
      %s274 = int_to_ptr.vmem [resolvable:$true] %s273
      %276 = dma.vmem_to_hbm [thread:$0]  %s274, 16, %s4, [#allocation5]
    $region41: #{tpu_custom_call.1} parent=1 // pred_fallthru
      _
    // Predicated region
    $region42: #{tpu_custom_call.1} parent=1 // pred_check
      _
    $region43: #{tpu_custom_call.1} parent=1 // pred_check_branch
      %278 = sbr.rel (0) target = $region45
    $region44: #{tpu_custom_call.1} parent=1 // pred_region
      %279 = dma.done [#allocation5], 16
    $region45: #{tpu_custom_call.1} parent=1 // pred_fallthru
      _
    %280 = vsyncpa [#allocation4], 1
    %281 = vsyncpa [#allocation7], 1
    %282 = vsyncpa [#allocation5], 1

</llo_original>
